<compile_context>
chip_gen: v6e
topology: v6e:2x2x1
jax: 0.10.0
libtpu: 0.0.40
codegen_flags: <defaults>
</compile_context>

<pallas_src>
import math

import jax
import jax.numpy as jnp
from jax.experimental import pallas as pl
from jax.experimental.pallas import tpu as pltpu

# ----------------------------- module hyper-parameters -----------------------------
NUM_PLAN = 10          # num_plan
NUM_CMDS = 6           # num_cmds
NUM_PLAN_ITER = 1      # num_plan_iter
PIXELS_PER_METER = 4
CROP_SIZE = 96
EMBD = 512             # plan_gru hidden == bev embedding dim (h0 = embd)
CAST_H = 64            # cast_grus hidden


# ===================================================================================
# 1) Normalize: out = img * (1/(255*std)) + (-mean/std)    grid=(B,), tile=(1,C,H*W)
# ===================================================================================
def _normalize_kernel(x_ref, scale_ref, bias_ref, o_ref):
    # (1, C, HW) * (1, C, 1) + (1, C, 1)  -> single FMA, lane-dense stores
    o_ref[...] = x_ref[...] * scale_ref[...] + bias_ref[...]


def normalize_pallas(img, mean, std):
    B, C, H, W = img.shape
    HW = H * W
    scale = (1.0 / (255.0 * std)).reshape(1, C, 1).astype(jnp.float32)
    bias = (-mean / std).reshape(1, C, 1).astype(jnp.float32)
    x = img.reshape(B, C, HW)
    out = pl.pallas_call(
        _normalize_kernel,
        grid=(B,),
        in_specs=[
            pl.BlockSpec((1, C, HW), lambda b: (b, 0, 0)),
            pl.BlockSpec((1, C, 1), lambda b: (0, 0, 0)),
            pl.BlockSpec((1, C, 1), lambda b: (0, 0, 0)),
        ],
        out_specs=pl.BlockSpec((1, C, HW), lambda b: (b, 0, 0)),
        out_shape=jax.ShapeDtypeStruct((B, C, HW), jnp.float32),
        compiler_params=pltpu.CompilerParams(
            dimension_semantics=("parallel",)),   # lets v7x shard B over its 2 TCs
    )(x, scale, bias)
    return out.reshape(B, C, H, W)


# ===================================================================================
# 2) Fused head: GAP + cast() + plan() + cast_cmd_pred in a single pallas_call
# ===================================================================================
def _fused_head_kernel(bev_ref, nxp_ref,
                       cwih_ref, cwhh_ref, cbih_ref, cbhh_ref, cwmlp_ref, cbmlp_ref,
                       pwih_ref, pwhh_ref, pbih_ref, pbhh_ref, pwmlp_ref, pbmlp_ref,
                       cmdw_ref, cmdb_ref,
                       cast_out_ref, plan_out_ref, cmd_out_ref):
    B = bev_ref.shape[0]
    C = NUM_CMDS
    T = NUM_PLAN
    Hc = CAST_H
    Hp = EMBD
    CB = C * B

    # ------------------- bev_conv_emb: global average pool -------------------
    # bev is (B, HW, 512): reduce the sublane (spatial) axis, channels stay on lanes.
    embd = jnp.mean(bev_ref[...], axis=1)                                  # (B, 512)

    # ------------------- cast(): 6 GRUs(512->64), input constant over time ----
    # Input gates for all 6 commands with one matmul: (B,512) @ (512, 6*192).
    gi_flat = jnp.dot(embd, cwih_ref[...],
                      preferred_element_type=jnp.float32)                  # (B, 6*192)
    gi = jnp.stack([gi_flat[:, c * 3 * Hc:(c + 1) * 3 * Hc] for c in range(C)],
                   axis=0)                                                 # (6, B, 192)
    gi = gi + cbih_ref[...][:, None, :]

    cwhh = cwhh_ref[...]                                                   # (6, 64, 192)
    cbhh = cbhh_ref[...][:, None, :]                                       # (6, 1, 192)

    h = jnp.zeros((C, B, Hc), jnp.float32)                                 # h0 = 0
    hs = []
    for _ in range(T):
        gh = jnp.einsum('cbh,chk->cbk', h, cwhh,
                        preferred_element_type=jnp.float32) + cbhh         # (6, B, 192)
        r = jax.nn.sigmoid(gi[..., :Hc] + gh[..., :Hc])
        z = jax.nn.sigmoid(gi[..., Hc:2 * Hc] + gh[..., Hc:2 * Hc])
        n = jnp.tanh(gi[..., 2 * Hc:] + r * gh[..., 2 * Hc:])
        h = (1.0 - z) * n + z * h
        hs.append(h)

    # Hoisted output mlp: one batched matmul over all timesteps, then cumsum.
    h_all = jnp.stack(hs, axis=1).reshape(C, T * B, Hc)                    # (6, T*B, 64)
    y_all = jnp.einsum('cxh,chk->cxk', h_all, cwmlp_ref[...],
                       preferred_element_type=jnp.float32)                 # (6, T*B, 2)
    y_all = y_all.reshape(C, T, B, 2)
    cbmlp = cbmlp_ref[...][:, None, :]                                     # (6, 1, 2)
    acc = jnp.zeros((C, B, 2), jnp.float32)
    cast_list = []
    for t in range(T):
        acc = acc + y_all[:, t] + cbmlp
        cast_list.append(acc)
    cast_locs = jnp.stack(cast_list, axis=2)                               # (6, B, T, 2)
    cast_out_ref[...] = cast_locs.reshape(C, B, T * 2)                     # single store

    # ------------------- cast_cmd_pred: Linear(512,6) + sigmoid ---------------
    cmd_out_ref[...] = jax.nn.sigmoid(
        jnp.dot(embd, cmdw_ref[...], preferred_element_type=jnp.float32)
        + cmdb_ref[...])                                                   # (B, 6)

    # ------------------- plan(): shared GRU(4->512), commands batched in M ----
    nxp = nxp_ref[...]                                                     # (B, 2)
    # _plan is called with crop_size = self.crop_size * 2
    u0 = nxp * (PIXELS_PER_METER / (CROP_SIZE * 2)) * 2.0 - 1.0            # (B, 2)
    # command-major stacking: row index = c*B + b
    u0_bc = jnp.concatenate([u0] * C, axis=0)                              # (6B, 2)
    embd_bc = jnp.concatenate([embd] * C, axis=0)                          # (6B, 512)

    pwih = pwih_ref[...]                                                   # (4, 1536) f32
    pbih = pbih_ref[...]                                                   # (1, 1536)
    pbhh = pbhh_ref[...]                                                   # (1, 1536)
    pwhh = pwhh_ref[...]                                                   # (512,1536) bf16

    # K=4 input projection stays on the VPU (broadcast FMAs); u0 part is constant in t.
    gi_base = (u0_bc[:, 0:1] * pwih[0:1, :] +
               u0_bc[:, 1:2] * pwih[1:2, :] + pbih)                        # (6B, 1536)
    wih_x = pwih[2:3, :]
    wih_y = pwih[3:4, :]

    plan_loc = cast_locs                                                   # (6, B, T, 2)
    plan_iter_outs = []
    for _ in range(NUM_PLAN_ITER):
        h = embd_bc                                                        # h0 = embd
        hs = []
        for t in range(T):
            c_t = plan_loc[:, :, t, :].reshape(CB, 2)                      # (6B, 2)
            gi_t = gi_base + c_t[:, 0:1] * wih_x + c_t[:, 1:2] * wih_y     # (6B, 1536)
            gh = jnp.dot(h.astype(jnp.bfloat16), pwhh,
                         preferred_element_type=jnp.float32) + pbhh        # (6B, 1536)
            r = jax.nn.sigmoid(gi_t[:, :Hp] + gh[:, :Hp])
            z = jax.nn.sigmoid(gi_t[:, Hp:2 * Hp] + gh[:, Hp:2 * Hp])
            n = jnp.tanh(gi_t[:, 2 * Hp:] + r * gh[:, 2 * Hp:])
            h = (1.0 - z) * n + z * h
            hs.append(h)

        # Hoisted plan mlp: single (T*6B, 512) @ (512, 2) matmul, then cumsum.
        h_all_p = jnp.stack(hs, axis=0).reshape(T * CB, Hp)
        y_all_p = (jnp.dot(h_all_p, pwmlp_ref[...],
                           preferred_element_type=jnp.float32)
                   + pbmlp_ref[...]).reshape(T, CB, 2)
        acc_p = jnp.zeros((CB, 2), jnp.float32)
        out_list = []
        for t in range(T):
            acc_p = acc_p + y_all_p[t]
            out_list.append(acc_p + plan_loc[:, :, t, :].reshape(CB, 2))
        plan_new = jnp.stack(out_list, axis=1)                             # (6B, T, 2)
        plan_loc = plan_new.reshape(C, B, T, 2)
        plan_iter_outs.append(plan_loc.reshape(C, B, T * 2))

    plan_out_ref[...] = jnp.stack(plan_iter_outs, axis=0)                  # single store


def fused_head_pallas(bev_hwc, nxps, p):
    """bev_hwc: (B, H*W, 512) channels-last BEV feature."""
    B = bev_hwc.shape[0]
    vmem = lambda: pl.BlockSpec(memory_space=pltpu.MemorySpace.VMEM)
    out_shape = (
        jax.ShapeDtypeStruct((NUM_CMDS, B, NUM_PLAN * 2), jnp.float32),                 # cast
        jax.ShapeDtypeStruct((NUM_PLAN_ITER, NUM_CMDS, B, NUM_PLAN * 2), jnp.float32),  # plan
        jax.ShapeDtypeStruct((B, NUM_CMDS), jnp.float32),                               # cmds
    )
    return pl.pallas_call(
        _fused_head_kernel,
        in_specs=[vmem() for _ in range(16)],
        out_specs=(vmem(), vmem(), vmem()),
        out_shape=out_shape,
    )(bev_hwc, nxps,
      p['cast_wih_all'], p['cast_whh_all'], p['cast_bih_all'], p['cast_bhh_all'],
      p['cast_wmlp_all'], p['cast_bmlp_all'],
      p['plan_wih_t'], p['plan_whh_t'], p['plan_bih'], p['plan_bhh'],
      p['plan_wmlp_t'], p['plan_bmlp'],
      p['cmd_w_t'], p['cmd_b'])


# ===================================================================================
# Parameter init (deterministic, PyTorch-style uniform ranges), pre-packed for kernels
# ===================================================================================
def init_params(key):
    ks = jax.random.split(key, 14)

    def u(k, shape, scale):
        return jax.random.uniform(k, shape, jnp.float32, -scale, scale)

    s_cast = 1.0 / math.sqrt(CAST_H)
    s_plan = 1.0 / math.sqrt(EMBD)

    # per-command cast GRU / mlp weights (stored transposed: kernels do x @ W)
    cast_wih = u(ks[0], (NUM_CMDS, EMBD, 3 * CAST_H), s_cast)        # (6, 512, 192)

    p = {
        # cast heads, packed for one input-gate matmul over all commands
        'cast_wih_all': jnp.transpose(cast_wih, (1, 0, 2)).reshape(EMBD, NUM_CMDS * 3 * CAST_H),
        'cast_whh_all': u(ks[1], (NUM_CMDS, CAST_H, 3 * CAST_H), s_cast),
        'cast_bih_all': u(ks[2], (NUM_CMDS, 3 * CAST_H), s_cast),
        'cast_bhh_all': u(ks[3], (NUM_CMDS, 3 * CAST_H), s_cast),
        'cast_wmlp_all': u(ks[4], (NUM_CMDS, CAST_H, 2), s_cast),
        'cast_bmlp_all': u(ks[5], (NUM_CMDS, 2), s_cast),
        # plan_gru: nn.GRU(4, 512);  whh in bf16 (weight-streaming bound, f32 accumulate)
        'plan_wih_t': u(ks[6], (4, 3 * EMBD), s_plan),
        'plan_whh_t': u(ks[7], (EMBD, 3 * EMBD), s_plan).astype(jnp.bfloat16),
        'plan_bih':   u(ks[8], (1, 3 * EMBD), s_plan),
        'plan_bhh':   u(ks[9], (1, 3 * EMBD), s_plan),
        # plan_mlp: nn.Linear(512, 2)
        'plan_wmlp_t': u(ks[10], (EMBD, 2), s_plan),
        'plan_bmlp':   u(ks[11], (1, 2), s_plan),
        # cast_cmd_pred: nn.Linear(512, 6) + sigmoid
        'cmd_w_t': u(ks[12], (EMBD, NUM_CMDS), s_plan),
        'cmd_b':   u(ks[13], (1, NUM_CMDS), s_plan),
    }
    return p


# ===================================================================================
# Forward
# ===================================================================================
def cat_planner_forward(img, nxps, bev_feat, params):
    # 1) Normalize(img/255)  (Pallas, lane-dense elementwise)
    mean = jnp.array([0.485, 0.456, 0.406], jnp.float32)
    std = jnp.array([0.229, 0.224, 0.225], jnp.float32)
    img_norm = normalize_pallas(img, mean, std)

    # TODO(synk): encoder / FPN / neck / Lane2D-Lane3D pathways / EncoderLayer
    # deformable-attention BEV stack not implementable (class defs not provided);
    # `bev_feat` stands in for `_x`.

    # 2..5) GAP + cast + plan + cast_cmd_pred, fused into one Pallas kernel.
    B, Cc, h, w = bev_feat.shape
    bev_hwc = bev_feat.reshape(B, Cc, h * w).transpose(0, 2, 1)            # (B, HW, C)
    cast_raw, plan_raw, ego_cast_cmds = fused_head_pallas(bev_hwc, nxps, params)

    # layout plumbing back to PyTorch shapes (wrapper-side, tiny tensors)
    ego_cast_locs = cast_raw.transpose(1, 0, 2).reshape(B, NUM_CMDS, NUM_PLAN, 2)
    ego_plan_locs = plan_raw.reshape(NUM_PLAN_ITER, NUM_CMDS, B, NUM_PLAN, 2)
    ego_plan_locs = ego_plan_locs.transpose(2, 0, 1, 3, 4)                 # (B, iter, 6, T, 2)

    # TODO(synk): down1/down2/down3, up1/up2/up3, segment_head (Down/Up class defs not
    # provided) -> pred_seg_bev_map not produced.
    return (ego_plan_locs, ego_cast_locs, ego_cast_cmds), img_norm


# ===================================================================================
if __name__ == "__main__":
    key = jax.random.PRNGKey(0)
    k_img, k_nxp, k_bev, k_par = jax.random.split(key, 4)

    B = 2
    img = jax.random.uniform(k_img, (B, 3, 16, 16), jnp.float32, 0.0, 255.0)   # NCHW raw
    nxps = jax.random.uniform(k_nxp, (B, 2), jnp.float32, 0.0, 96.0)           # next waypoint
    bev_feat = jax.random.normal(k_bev, (B, EMBD, 8, 8), jnp.float32)          # stand-in `_x`

    params = init_params(k_par)

    (plan_locs, cast_locs, cast_cmds), img_norm = cat_planner_forward(img, nxps, bev_feat, params)
    jax.block_until_ready((plan_locs, cast_locs, cast_cmds, img_norm))

    assert plan_locs.shape == (B, NUM_PLAN_ITER, NUM_CMDS, NUM_PLAN, 2)
    assert cast_locs.shape == (B, NUM_CMDS, NUM_PLAN, 2)
    assert cast_cmds.shape == (B, NUM_CMDS)
    assert img_norm.shape == img.shape
    assert bool(jnp.all(jnp.isfinite(plan_locs)))
    assert bool(jnp.all(jnp.isfinite(cast_locs)))
    assert bool(jnp.all(jnp.isfinite(cast_cmds)))
    print("KERNEL_OK")
</pallas_src>

<mosaic_0001>
module attributes {stable_mosaic.version = 11 : i64} {
  func.func @_normalize_kernel(%arg0: i32, %arg1: memref<1x3x256xf32, #tpu.memory_space<vmem>>, %arg2: memref<1x3x1xf32, #tpu.memory_space<vmem>>, %arg3: memref<1x3x1xf32, #tpu.memory_space<vmem>>, %arg4: memref<1x3x256xf32, #tpu.memory_space<vmem>>) attributes {dimension_semantics = [#tpu.dimension_semantics<parallel>], iteration_bounds = array<i64: 2>, scalar_prefetch = 0 : i64, scratch_operands = 0 : i64, tpu.core_type = #tpu.core_type<tc>, window_params = [{transform_indices = @transform_0, window_bounds = array<i64: 1, 3, 256>}, {pipeline_mode = #tpu.pipeline_mode<synchronous>, transform_indices = @transform_1, window_bounds = array<i64: 1, 3, 1>}, {pipeline_mode = #tpu.pipeline_mode<synchronous>, transform_indices = @transform_2, window_bounds = array<i64: 1, 3, 1>}, {transform_indices = @transform_3, window_bounds = array<i64: 1, 3, 256>}]} {
    %c0 = arith.constant 0 : index
    %c0_0 = arith.constant 0 : index
    %c0_1 = arith.constant 0 : index
    %0 = vector.load %arg1[%c0, %c0_0, %c0_1] : memref<1x3x256xf32, #tpu.memory_space<vmem>>, vector<1x3x256xf32>
    %c0_2 = arith.constant 0 : index
    %c0_3 = arith.constant 0 : index
    %c0_4 = arith.constant 0 : index
    %1 = vector.load %arg2[%c0_2, %c0_3, %c0_4] : memref<1x3x1xf32, #tpu.memory_space<vmem>>, vector<1x3x1xf32>
    %2 = vector.broadcast %1 : vector<1x3x1xf32> to vector<1x3x256xf32>
    %3 = arith.mulf %0, %2 : vector<1x3x256xf32>
    %c0_5 = arith.constant 0 : index
    %c0_6 = arith.constant 0 : index
    %c0_7 = arith.constant 0 : index
    %4 = vector.load %arg3[%c0_5, %c0_6, %c0_7] : memref<1x3x1xf32, #tpu.memory_space<vmem>>, vector<1x3x1xf32>
    %5 = vector.broadcast %4 : vector<1x3x1xf32> to vector<1x3x256xf32>
    %6 = arith.addf %3, %5 : vector<1x3x256xf32>
    %c0_8 = arith.constant 0 : index
    %c0_9 = arith.constant 0 : index
    %c0_10 = arith.constant 0 : index
    %7 = vector.load %arg4[%c0_8, %c0_9, %c0_10] : memref<1x3x256xf32, #tpu.memory_space<vmem>>, vector<1x3x256xf32>
    tpu.vector_store %arg4[%c0_8, %c0_9, %c0_10], %6 {strides = array<i32>} : memref<1x3x256xf32, #tpu.memory_space<vmem>>, vector<1x3x256xf32>,
    return
  }
  func.func @transform_0(%arg0: i32) -> (i32, i32, i32) {
    %c0_i32 = arith.constant 0 : i32
    %c0_i32_0 = arith.constant 0 : i32
    %c0_i32_1 = arith.constant 0 : i32
    return %arg0, %c0_i32, %c0_i32_0 : i32, i32, i32
  }
  func.func @transform_1(%arg0: i32) -> (i32, i32, i32) {
    %c0_i32 = arith.constant 0 : i32
    %c0_i32_0 = arith.constant 0 : i32
    %c0_i32_1 = arith.constant 0 : i32
    %c0_i32_2 = arith.constant 0 : i32
    return %c0_i32, %c0_i32_0, %c0_i32_1 : i32, i32, i32
  }
  func.func @transform_2(%arg0: i32) -> (i32, i32, i32) {
    %c0_i32 = arith.constant 0 : i32
    %c0_i32_0 = arith.constant 0 : i32
    %c0_i32_1 = arith.constant 0 : i32
    %c0_i32_2 = arith.constant 0 : i32
    return %c0_i32, %c0_i32_0, %c0_i32_1 : i32, i32, i32
  }
  func.func @transform_3(%arg0: i32) -> (i32, i32, i32) {
    %c0_i32 = arith.constant 0 : i32
    %c0_i32_0 = arith.constant 0 : i32
    %c0_i32_1 = arith.constant 0 : i32
    return %arg0, %c0_i32, %c0_i32_0 : i32, i32, i32
  }
}

</mosaic_0001>

<llo_original>
// kernel: tpu_custom_call.1
$region0: #{tpu_custom_call.1}
  #allocation0 [shape = 'u32[]', space=smem, size = 0x4, offset = 0x4, fixed_abs, tag = 'smem constant byte address 0x4 - core index']
  #allocation1 [shape = 'u32[144,128]{1,0:T(1,128)}', space=vmem, size = 0x12000, scoped, tag = 'internal scratch']
  %s0 = inlined_call_operand.vmem [shape: f32[2,3,256], index: 0, kind: input, shape index: {}]
  %s1 = inlined_call_operand.vmem [shape: f32[1,3,1], index: 1, kind: input, shape index: {}]
  %s2 = inlined_call_operand.vmem [shape: f32[1,3,1], index: 2, kind: input, shape index: {}]
  %s3 = inlined_call_operand.vmem [shape: f32[2,3,256], index: 3, kind: output, shape index: {}]
  %s4 = sld [smem:[#allocation0]]
  $region45: #{tpu_custom_call.1} parent=0
    _
  %s6 = ssub.s32 1, %s4
  %s7 = scalar_select 0, %s6, %s4
  loop: start=0, step=1, limit=4
  $region2: #{tpu_custom_call.1} parent=0 // loop_pre_header
    _
  $region3: #{tpu_custom_call.1} parent=0 // loop_header
    %s9 = sphi 0, %s13
    %p10 = scmp.ge.s32.totalorder %s9, 4
    %s19 = sphi 0, %s21
    %s22 = sphi 0, %s19
    %s23 = sphi 0, %s22
    %s39 = sphi 0, %s23
    %s43 = sphi 0, %s43
    %s45 = sphi 0, %s43
    %s46 = sphi 0, %s45
    %s60 = sphi 0, %s46
    %s64 = sphi 0, %s64
    %s66 = sphi 0, %s64
    %s67 = sphi 0, %s66
    %s81 = sphi 0, %s67
    %s87 = sphi 0, %s89
    %s90 = sphi 0, %s87
    %s91 = sphi 0, %s90
    %s107 = sphi 0, %s91
  $region4: #{tpu_custom_call.1} parent=0 // loop_header_branch
    %12 = sbr.rel (%p10) target = $region8
  $region5: #{tpu_custom_call.1} parent=0 // loop_body
    %s14 = ssub.s32 %s9, 1
    %s15 = ssub.s32 %s9, 2
    %s16 = sadd.s32 %s9, 1
    %s17 = ssub.s32 %s9, %s16
    %p18 = scmp.eq.s32.totalorder %s17, 0
    %s20 = sadd.s32 %s19, 1
    %s21 = scalar_select %p18, %s19, %s20
    %p24 = pneg %p18
    %p25 = scmp.eq.s32.totalorder %s9, 1
    %p26 = por %p24, %p25
    %p27 = scmp.ne.s32.totalorder %s19, %s22
    %p28 = scmp.eq.s32.totalorder %s9, 0
    %p29 = por %p27, %p28
    %p30 = scmp.ne.s32.totalorder %s19, %s22
    %p31 = scmp.eq.s32.totalorder %s14, 1
    %p32 = por %p30, %p31
    %p33 = scmp.ne.s32.totalorder %s22, %s23
    %p34 = scmp.eq.s32.totalorder %s14, 0
    %p35 = por %p33, %p34
    %p36 = scmp.ne.s32.totalorder %s22, %s23
    %p37 = scmp.eq.s32.totalorder %s15, 1
    %p38 = por %p36, %p37
    %p40 = scmp.ne.s32.totalorder %s23, %s39
    %p41 = scmp.eq.s32.totalorder %s15, 0
    %p42 = por %p40, %p41
    %s44 = sadd.s32 %s43, 1
    %p47 = scmp.eq.s32.totalorder %s9, 1
    %p48 = scmp.ne.s32.totalorder %s43, %s45
    %p49 = scmp.eq.s32.totalorder %s9, 0
    %p50 = por %p48, %p49
    %p51 = scmp.ne.s32.totalorder %s43, %s45
    %p52 = scmp.eq.s32.totalorder %s14, 1
    %p53 = por %p51, %p52
    %p54 = scmp.ne.s32.totalorder %s45, %s46
    %p55 = scmp.eq.s32.totalorder %s14, 0
    %p56 = por %p54, %p55
    %p57 = scmp.ne.s32.totalorder %s45, %s46
    %p58 = scmp.eq.s32.totalorder %s15, 1
    %p59 = por %p57, %p58
    %p61 = scmp.ne.s32.totalorder %s46, %s60
    %p62 = scmp.eq.s32.totalorder %s15, 0
    %p63 = por %p61, %p62
    %s65 = sadd.s32 %s64, 1
    %p68 = scmp.eq.s32.totalorder %s9, 1
    %p69 = scmp.ne.s32.totalorder %s64, %s66
    %p70 = scmp.eq.s32.totalorder %s9, 0
    %p71 = por %p69, %p70
    %p72 = scmp.ne.s32.totalorder %s64, %s66
    %p73 = scmp.eq.s32.totalorder %s14, 1
    %p74 = por %p72, %p73
    %p75 = scmp.ne.s32.totalorder %s66, %s67
    %p76 = scmp.eq.s32.totalorder %s14, 0
    %p77 = por %p75, %p76
    %p78 = scmp.ne.s32.totalorder %s66, %s67
    %p79 = scmp.eq.s32.totalorder %s15, 1
    %p80 = por %p78, %p79
    %p82 = scmp.ne.s32.totalorder %s67, %s81
    %p83 = scmp.eq.s32.totalorder %s15, 0
    %p84 = por %p82, %p83
    %s85 = ssub.s32 %s9, %s16
    %p86 = scmp.eq.s32.totalorder %s85, 0
    %s88 = sadd.s32 %s87, 1
    %s89 = scalar_select %p86, %s87, %s88
    %p92 = pneg %p86
    %p93 = scmp.eq.s32.totalorder %s9, 1
    %p94 = por %p92, %p93
    %p95 = scmp.ne.s32.totalorder %s87, %s90
    %p96 = scmp.eq.s32.totalorder %s9, 0
    %p97 = por %p95, %p96
    %p98 = scmp.ne.s32.totalorder %s87, %s90
    %p99 = scmp.eq.s32.totalorder %s14, 1
    %p100 = por %p98, %p99
    %p101 = scmp.ne.s32.totalorder %s90, %s91
    %p102 = scmp.eq.s32.totalorder %s14, 0
    %p103 = por %p101, %p102
    %p104 = scmp.ne.s32.totalorder %s90, %s91
    %p105 = scmp.eq.s32.totalorder %s15, 1
    %p106 = por %p104, %p105
    %p108 = scmp.ne.s32.totalorder %s91, %s107
    %p109 = scmp.eq.s32.totalorder %s15, 0
    %p110 = por %p108, %p109
    %p111 = scmp.le.s32.totalorder 1, %s9
    %p112 = scmp.lt.s32.totalorder %s9, 3
    %p113 = pnand %p111, %p112
    %p114 = pneg %p113
    // Predicated region
    $region9: #{tpu_custom_call.1} parent=5 // pred_check
      _
    $region10: #{tpu_custom_call.1} parent=5 // pred_check_branch
      %116 = sbr.rel (%p113) target = $region12
    $region11: #{tpu_custom_call.1} parent=5 // pred_region
      %s117 = ssub.s32 %s9, 1
      // Predicated region
      $region13: #{tpu_custom_call.1} parent=11 // pred_check
        %p118 = pneg %p56
      $region14: #{tpu_custom_call.1} parent=11 // pred_check_branch
        %120 = sbr.rel (%p118) target = $region16
      $region15: #{tpu_custom_call.1} parent=11 // pred_region
        _
      $region16: #{tpu_custom_call.1} parent=11 // pred_fallthru
        _
      // Predicated region
      $region17: #{tpu_custom_call.1} parent=11 // pred_check
        %p121 = pneg %p77
      $region18: #{tpu_custom_call.1} parent=11 // pred_check_branch
        %123 = sbr.rel (%p121) target = $region20
      $region19: #{tpu_custom_call.1} parent=11 // pred_region
        _
      $region20: #{tpu_custom_call.1} parent=11 // pred_fallthru
        _
    $region12: #{tpu_custom_call.1} parent=5 // pred_fallthru
      _
    %p124 = scmp.lt.s32.totalorder %s9, 2
    // Predicated region
    $region21: #{tpu_custom_call.1} parent=5 // pred_check
      %p125 = pneg %p124
    $region22: #{tpu_custom_call.1} parent=5 // pred_check_branch
      %127 = sbr.rel (%p125) target = $region24
    $region23: #{tpu_custom_call.1} parent=5 // pred_region
      // Predicated region
      $region25: #{tpu_custom_call.1} parent=23 // pred_check
        %p128 = pneg %p29
      $region26: #{tpu_custom_call.1} parent=23 // pred_check_branch
        %130 = sbr.rel (%p128) target = $region28
      $region27: #{tpu_custom_call.1} parent=23 // pred_region
        %p131 = scmp.lt.s32.totalorder %s9, 1
        %s132 = scalar_select %p131, %s9, 1
        %s133 = smul.addr %s132, 2
        %s134 = smul.addr %s133, 4
        %s135 = scalar_lea.vmem %s0, %s134
      $region28: #{tpu_custom_call.1} parent=23 // pred_fallthru
        _
    $region24: #{tpu_custom_call.1} parent=5 // pred_fallthru
      _
    %p136 = scmp.le.s32.totalorder 1, %s9
    %p137 = scmp.lt.s32.totalorder %s9, 3
    %p138 = pnand %p136, %p137
    %p139 = pneg %p138
    // Predicated region
    $region29: #{tpu_custom_call.1} parent=5 // pred_check
      _
    $region30: #{tpu_custom_call.1} parent=5 // pred_check_branch
      %141 = sbr.rel (%p138) target = $region32
    $region31: #{tpu_custom_call.1} parent=5 // pred_region
      %s142 = ssub.s32 %s9, 1
      %p143 = scmp.lt.s32.totalorder %s14, 1
      %s144 = scalar_select %p143, %s14, 1
      %s145 = smul.addr %s144, 2
      %s146 = smul.addr %s145, 4
      %s147 = scalar_lea.vmem %s0, %s146
      %p148 = pneg %p35
      %p149 = pneg %p32
      %p150 = pneg %p56
      %p151 = pneg %p53
      %p152 = pneg %p77
      %p153 = pneg %p74
      %p154 = pneg %p103
      %p155 = pneg %p100
      %p156 = scmp.lt.s32.totalorder %s14, 1
      %s157 = scalar_select %p156, %s14, 1
      %s158 = smul.addr %s157, 2
      %s159 = smul.addr %s158, 4
      %s160 = scalar_lea.vmem %s3, %s159
      %p161 = scmp.lt.s32.totalorder %s14, 1
      %s162 = scalar_select %p161, %s14, 1
      %s163 = smul.addr %s162, 2
      %s164 = smul.addr %s163, 4
      %s165 = scalar_lea.vmem %s0, %s164
      %p166 = scmp.lt.s32.totalorder %s14, 1
      %s167 = scalar_select %p166, %s14, 1
      %s168 = smul.addr %s167, 2
      %s169 = smul.addr %s168, 4
      %s170 = scalar_lea.vmem %s3, %s169
      %v171 = vld [vmem:[%s165] sm:$0x77]
      %v172 = vld [vmem:[%s1] sm:$0x7]
      %174 = vset.pattern.permute.xlu0 0
      %175 = vperm.xlu0 %174, %v172
      %v176 = vpop.permute.xlu0 %175
      %v178 = vunpack.c.l.s4 839922192
      %v179 = vunpack.c.0.s8 %v178
      %v180 = vlaneseq
      %v181 = vshrl.u32 %v180, 7
      %v182 = vsub.s32 %v179, %v181
      %v183 = vrot.slane %v176, %v182
      %v185 = vmul.f32 %v171, %v183
      %v186 = vld [vmem:[%s2] sm:$0x7]
      %188 = vset.pattern.permute.xlu0 0
      %189 = vperm.xlu0 %188, %v186
      %v190 = vpop.permute.xlu0 %189
      %v192 = vunpack.c.l.s4 839922192
      %v193 = vunpack.c.0.s8 %v192
      %v194 = vlaneseq
      %v195 = vshrl.u32 %v194, 7
      %v196 = vsub.s32 %v193, %v195
      %v197 = vrot.slane %v190, %v196
      %v199 = vadd.f32 %v185, %v197
      %200 = vst [vmem:[%s170] sm:$0x77] %v199
      %p201 = scmp.lt.s32.totalorder %s14, 1
      %s202 = scalar_select %p201, %s14, 1
      %s203 = smul.addr %s202, 2
      %s204 = smul.addr %s203, 4
      %s205 = scalar_lea.vmem %s3, %s204
      // Predicated region
      $region33: #{tpu_custom_call.1} parent=31 // pred_check
        %p206 = pneg %p100
      $region34: #{tpu_custom_call.1} parent=31 // pred_check_branch
        %208 = sbr.rel (%p206) target = $region36
      $region35: #{tpu_custom_call.1} parent=31 // pred_region
        _
      $region36: #{tpu_custom_call.1} parent=31 // pred_fallthru
        _
    $region32: #{tpu_custom_call.1} parent=5 // pred_fallthru
      _
    %p209 = scmp.le.s32.totalorder 2, %s9
    // Predicated region
    $region37: #{tpu_custom_call.1} parent=5 // pred_check
      %p210 = pneg %p209
    $region38: #{tpu_custom_call.1} parent=5 // pred_check_branch
      %212 = sbr.rel (%p210) target = $region40
    $region39: #{tpu_custom_call.1} parent=5 // pred_region
      %s213 = ssub.s32 %s9, 2
      // Predicated region
      $region41: #{tpu_custom_call.1} parent=39 // pred_check
        %p214 = pneg %p106
      $region42: #{tpu_custom_call.1} parent=39 // pred_check_branch
        %216 = sbr.rel (%p214) target = $region44
      $region43: #{tpu_custom_call.1} parent=39 // pred_region
        %p217 = scmp.lt.s32.totalorder %s15, 1
        %s218 = scalar_select %p217, %s15, 1
        %s219 = smul.addr %s218, 2
        %s220 = smul.addr %s219, 4
        %s221 = scalar_lea.vmem %s3, %s220
      $region44: #{tpu_custom_call.1} parent=39 // pred_fallthru
        _
    $region40: #{tpu_custom_call.1} parent=5 // pred_fallthru
      _
  $region6: #{tpu_custom_call.1} parent=0 // loop_footer
    %s13 = sadd.s32 1, %s9
  $region7: #{tpu_custom_call.1} parent=0 // loop_footer_branch
    %8 = sbr.rel target = $region3
  $region8: #{tpu_custom_call.1} parent=0 // loop_exit
    _

</llo_original>
